<compile_context>
chip_gen: v7x
topology: tpu7x:2x2x1
jax: 0.10.0
libtpu: 0.0.40
codegen_flags: <defaults>
</compile_context>

<pallas_src>
import jax
import jax.numpy as jnp
from jax.experimental import pallas as pl
from jax.experimental.pallas import tpu as pltpu


# ---- Pass 1: GEMM (recomputed, not stored) + BN statistics accumulation -----------------
def gemm_stats_kernel(x_ref, wt_ref, sum_ref, sq_ref):
    # x_ref: (Cin, ts)   wt_ref: (K8, Cin)   sum_ref / sq_ref: (K8, 1) accumulators
    @pl.when(pl.program_id(1) == 0)
    def _():
        sum_ref[...] = jnp.zeros_like(sum_ref)
        sq_ref[...] = jnp.zeros_like(sq_ref)

    p = jnp.dot(wt_ref[...], x_ref[...], preferred_element_type=jnp.float32)  # (K8, ts)
    sum_ref[...] += jnp.sum(p, axis=-1, keepdims=True)
    sq_ref[...] += jnp.sum(p * p, axis=-1, keepdims=True)


# ---- Pass 2: recompute GEMM + fused BatchNorm affine + ReLU ------------------------------
def gemm_bn_relu_kernel(x_ref, wt_ref, scale_ref, shift_ref, o_ref):
    # x_ref: (Cin, ts)   wt_ref: (K8, Cin)   scale/shift: (K8, 1)   o_ref: (K8, ts)
    p = jnp.dot(wt_ref[...], x_ref[...], preferred_element_type=jnp.float32)
    o_ref[...] = jnp.maximum(p * scale_ref[...] + shift_ref[...], 0.0)


def deconv3d_block(x, weight, bias, gamma, beta, eps=1e-5, ts_max=2048):
    """x: (N, Cin, D, H, W); weight: (Cin, Cout, 2, 2, 2); bias/gamma/beta: (Cout,)."""
    N, Cin, D, H, W = x.shape
    Cout = weight.shape[1]
    K8 = Cout * 8
    DHW = D * H * W

    # Bias before training-mode BatchNorm is algebraically cancelled -> drop it entirely.
    del bias

    # Free reshape: NCDHW is already contiguous as (N, Cin, D*H*W). No input transpose.
    x3 = x.reshape(N, Cin, DHW).astype(jnp.float32)
    wt = weight.reshape(Cin, K8).T.astype(jnp.float32)  # (K8, Cin), tiny

    # Lane tile along the spatial axis: full extent if it fits, otherwise a multiple of 128
    # with zero padding (zero columns contribute 0 to sum and sumsq since there is no bias,
    # so the statistics stay exact; padded outputs are sliced off below).
    if DHW <= ts_max:
        ts = DHW
        s_pad = DHW
    else:
        ts = ts_max  # multiple of 128
        s_pad = pl.cdiv(DHW, ts) * ts
        if s_pad != DHW:
            x3 = jnp.pad(x3, ((0, 0), (0, 0), (0, s_pad - DHW)))

    grid = (N, s_pad // ts)

    # --- Pass 1: BN statistics (per-batch partial accumulators; batch axis is parallel so
    #     v7x can split it across its 2 TensorCores; reduction axis is innermost/arbitrary).
    col_sum, col_sq = pl.pallas_call(
        gemm_stats_kernel,
        out_shape=(
            jax.ShapeDtypeStruct((N, K8, 1), jnp.float32),
            jax.ShapeDtypeStruct((N, K8, 1), jnp.float32),
        ),
        grid=grid,
        in_specs=[
            pl.BlockSpec((None, Cin, ts), lambda n, s: (n, 0, s)),
            pl.BlockSpec((K8, Cin), lambda n, s: (0, 0)),
        ],
        out_specs=(
            pl.BlockSpec((None, K8, 1), lambda n, s: (n, 0, 0)),
            pl.BlockSpec((None, K8, 1), lambda n, s: (n, 0, 0)),
        ),
        compiler_params=pltpu.CompilerParams(
            dimension_semantics=("parallel", "arbitrary")),
    )(x3, wt)

    # Fold the 8 kernel taps of each channel + the batch partials into per-channel stats.
    count = jnp.float32(N * DHW * 8)  # == N * (2D) * (2H) * (2W)
    ch_sum = col_sum.reshape(N, Cout, 8).sum(axis=(0, 2))
    ch_sq = col_sq.reshape(N, Cout, 8).sum(axis=(0, 2))
    mean = ch_sum / count
    # TODO(synk): switch to a shifted/two-pass variance if |mean| >> std at very large M.
    var = jnp.maximum(ch_sq / count - mean * mean, 0.0)  # biased var (BN training mode)
    scale = gamma.astype(jnp.float32) * jax.lax.rsqrt(var + eps)
    shift = beta.astype(jnp.float32) - mean * scale
    scale_col = jnp.repeat(scale, 8).reshape(K8, 1)
    shift_col = jnp.repeat(shift, 8).reshape(K8, 1)

    # --- Pass 2: recompute GEMM, fused BN affine + ReLU, lane-dense (K8, ts) stores.
    out_t = pl.pallas_call(
        gemm_bn_relu_kernel,
        out_shape=jax.ShapeDtypeStruct((N, K8, s_pad), jnp.float32),
        grid=grid,
        in_specs=[
            pl.BlockSpec((None, Cin, ts), lambda n, s: (n, 0, s)),
            pl.BlockSpec((K8, Cin), lambda n, s: (0, 0)),
            pl.BlockSpec((K8, 1), lambda n, s: (0, 0)),
            pl.BlockSpec((K8, 1), lambda n, s: (0, 0)),
        ],
        out_specs=pl.BlockSpec((None, K8, ts), lambda n, s: (n, 0, s)),
        compiler_params=pltpu.CompilerParams(
            dimension_semantics=("parallel", "parallel")),
    )(x3, wt, scale_col, shift_col)

    # Glue: scatter the 2x2x2 taps back into the upsampled NCDHW volume.
    out_t = out_t[:, :, :DHW]  # drop spatial padding (no-op when s_pad == DHW)
    out = out_t.reshape(N, Cout, 2, 2, 2, D, H, W)
    out = jnp.transpose(out, (0, 1, 5, 2, 6, 3, 7, 4))  # (n, c, d, kd, h, kh, w, kw)
    return out.reshape(N, Cout, 2 * D, 2 * H, 2 * W)


def reference(x, weight, bias, gamma, beta, eps=1e-5):
    """Pure-JAX reference matching PyTorch semantics (training-mode BN)."""
    N, Cin, D, H, W = x.shape
    Cout = weight.shape[1]
    y = jnp.einsum("ncdhw,coxyz->nodxhywz", x, weight)
    y = y + bias[None, :, None, None, None, None, None, None]
    y = y.reshape(N, Cout, 2 * D, 2 * H, 2 * W)
    mean = y.mean(axis=(0, 2, 3, 4), keepdims=True)
    var = ((y - mean) ** 2).mean(axis=(0, 2, 3, 4), keepdims=True)
    yhat = (y - mean) / jnp.sqrt(var + eps)
    yhat = yhat * gamma[None, :, None, None, None] + beta[None, :, None, None, None]
    return jnp.maximum(yhat, 0.0)


if __name__ == "__main__":
    key = jax.random.PRNGKey(0)
    k_x, k_w, k_b = jax.random.split(key, 3)

    N, Cin, Cout, D, H, W = 2, 4, 8, 8, 8, 8
    x = jax.random.normal(k_x, (N, Cin, D, H, W), dtype=jnp.float32)
    # ConvTranspose3d weight layout: (in_channels, out_channels, 2, 2, 2)
    weight = 0.1 * jax.random.normal(k_w, (Cin, Cout, 2, 2, 2), dtype=jnp.float32)
    bias = 0.1 * jax.random.normal(k_b, (Cout,), dtype=jnp.float32)
    # BatchNorm3d default init: gamma = 1, beta = 0.
    gamma = jnp.ones((Cout,), dtype=jnp.float32)
    beta = jnp.zeros((Cout,), dtype=jnp.float32)

    out = deconv3d_block(x, weight, bias, gamma, beta)
    out = jax.block_until_ready(out)

    ref = reference(x, weight, bias, gamma, beta)
    assert out.shape == (N, Cout, 2 * D, 2 * H, 2 * W)
    assert jnp.allclose(out, ref, atol=1e-4, rtol=1e-4), "mismatch vs reference"

    print("KERNEL_OK")
</pallas_src>

<mosaic_0001>
module attributes {stable_mosaic.version = 11 : i64} {
  func.func @gemm_stats_kernel(%arg0: i32, %arg1: i32, %arg2: memref<1x4x512xf32, #tpu.memory_space<vmem>>, %arg3: memref<64x4xf32, #tpu.memory_space<vmem>>, %arg4: memref<1x64x1xf32, #tpu.memory_space<vmem>>, %arg5: memref<1x64x1xf32, #tpu.memory_space<vmem>>) attributes {dimension_semantics = [#tpu.dimension_semantics<parallel>, #tpu.dimension_semantics<arbitrary>], iteration_bounds = array<i64: 2, 1>, scalar_prefetch = 0 : i64, scratch_operands = 0 : i64, tpu.core_type = #tpu.core_type<tc>, window_params = [{transform_indices = @transform_0, window_bounds = array<i64: 1, 4, 512>}, {pipeline_mode = #tpu.pipeline_mode<synchronous>, transform_indices = @transform_1, window_bounds = array<i64: 64, 4>}, {transform_indices = @transform_2, window_bounds = array<i64: 1, 64, 1>}, {transform_indices = @transform_3, window_bounds = array<i64: 1, 64, 1>}]} {
    %c0_i32 = arith.constant 0 : i32
    %0 = arith.cmpi eq, %arg1, %c0_i32 : i32
    %1 = arith.extui %0 : i1 to i32
    %c0_i32_0 = arith.constant 0 : i32
    %2 = arith.cmpi ne, %1, %c0_i32_0 : i32
    scf.if %2 {
      %cst_19 = arith.constant 0.000000e+00 : f32
      %24 = vector.broadcast %cst_19 : f32 to vector<64x1xf32>
      %c0_20 = arith.constant 0 : index
      %c0_21 = arith.constant 0 : index
      %c0_22 = arith.constant 0 : index
      %25 = vector.load %arg4[%c0_20, %c0_21, %c0_22] : memref<1x64x1xf32, #tpu.memory_space<vmem>>, vector<1x64x1xf32>
      %26 = vector.shape_cast %25 : vector<1x64x1xf32> to vector<64x1xf32>
      %27 = vector.shape_cast %24 : vector<64x1xf32> to vector<1x64x1xf32>
      tpu.vector_store %arg4[%c0_20, %c0_21, %c0_22], %27 {strides = array<i32>} : memref<1x64x1xf32, #tpu.memory_space<vmem>>, vector<1x64x1xf32>,
      %cst_23 = arith.constant 0.000000e+00 : f32
      %28 = vector.broadcast %cst_23 : f32 to vector<64x1xf32>
      %c0_24 = arith.constant 0 : index
      %c0_25 = arith.constant 0 : index
      %c0_26 = arith.constant 0 : index
      %29 = vector.load %arg5[%c0_24, %c0_25, %c0_26] : memref<1x64x1xf32, #tpu.memory_space<vmem>>, vector<1x64x1xf32>
      %30 = vector.shape_cast %29 : vector<1x64x1xf32> to vector<64x1xf32>
      %31 = vector.shape_cast %28 : vector<64x1xf32> to vector<1x64x1xf32>
      tpu.vector_store %arg5[%c0_24, %c0_25, %c0_26], %31 {strides = array<i32>} : memref<1x64x1xf32, #tpu.memory_space<vmem>>, vector<1x64x1xf32>,
    } else {
    }
    %c0 = arith.constant 0 : index
    %c0_1 = arith.constant 0 : index
    %3 = vector.load %arg3[%c0, %c0_1] : memref<64x4xf32, #tpu.memory_space<vmem>>, vector<64x4xf32>
    %c0_2 = arith.constant 0 : index
    %c0_3 = arith.constant 0 : index
    %c0_4 = arith.constant 0 : index
    %4 = vector.load %arg2[%c0_2, %c0_3, %c0_4] : memref<1x4x512xf32, #tpu.memory_space<vmem>>, vector<1x4x512xf32>
    %5 = vector.shape_cast %4 : vector<1x4x512xf32> to vector<4x512xf32>
    %cst = arith.constant dense<0.000000e+00> : vector<64x512xf32>
    %6 = tpu.matmul %3, %5, %cst {dimension_numbers = #tpu.dot_dimension_numbers<[1], [0], [0], [1], [0, 0, 1, 1], [], []>} : vector<64x4xf32>, vector<4x512xf32>, vector<64x512xf32> -> vector<64x512xf32>
    %c0_5 = arith.constant 0 : index
    %c0_6 = arith.constant 0 : index
    %c0_7 = arith.constant 0 : index
    %7 = vector.load %arg4[%c0_5, %c0_6, %c0_7] : memref<1x64x1xf32, #tpu.memory_space<vmem>>, vector<1x64x1xf32>
    %8 = vector.shape_cast %7 : vector<1x64x1xf32> to vector<64x1xf32>
    %cst_8 = arith.constant dense<0.000000e+00> : vector<64xf32>
    %9 = vector.multi_reduction <add>, %6, %cst_8 [1] : vector<64x512xf32> to vector<64xf32>
    %10 = vector.shape_cast %9 : vector<64xf32> to vector<64x1xf32>
    %11 = arith.addf %8, %10 : vector<64x1xf32>
    %c0_9 = arith.constant 0 : index
    %c0_10 = arith.constant 0 : index
    %c0_11 = arith.constant 0 : index
    %12 = vector.load %arg4[%c0_9, %c0_10, %c0_11] : memref<1x64x1xf32, #tpu.memory_space<vmem>>, vector<1x64x1xf32>
    %13 = vector.shape_cast %12 : vector<1x64x1xf32> to vector<64x1xf32>
    %14 = vector.shape_cast %11 : vector<64x1xf32> to vector<1x64x1xf32>
    tpu.vector_store %arg4[%c0_9, %c0_10, %c0_11], %14 {strides = array<i32>} : memref<1x64x1xf32, #tpu.memory_space<vmem>>, vector<1x64x1xf32>,
    %c0_12 = arith.constant 0 : index
    %c0_13 = arith.constant 0 : index
    %c0_14 = arith.constant 0 : index
    %15 = vector.load %arg5[%c0_12, %c0_13, %c0_14] : memref<1x64x1xf32, #tpu.memory_space<vmem>>, vector<1x64x1xf32>
    %16 = vector.shape_cast %15 : vector<1x64x1xf32> to vector<64x1xf32>
    %17 = arith.mulf %6, %6 : vector<64x512xf32>
    %cst_15 = arith.constant dense<0.000000e+00> : vector<64xf32>
    %18 = vector.multi_reduction <add>, %17, %cst_15 [1] : vector<64x512xf32> to vector<64xf32>
    %19 = vector.shape_cast %18 : vector<64xf32> to vector<64x1xf32>
    %20 = arith.addf %16, %19 : vector<64x1xf32>
    %c0_16 = arith.constant 0 : index
    %c0_17 = arith.constant 0 : index
    %c0_18 = arith.constant 0 : index
    %21 = vector.load %arg5[%c0_16, %c0_17, %c0_18] : memref<1x64x1xf32, #tpu.memory_space<vmem>>, vector<1x64x1xf32>
    %22 = vector.shape_cast %21 : vector<1x64x1xf32> to vector<64x1xf32>
    %23 = vector.shape_cast %20 : vector<64x1xf32> to vector<1x64x1xf32>
    tpu.vector_store %arg5[%c0_16, %c0_17, %c0_18], %23 {strides = array<i32>} : memref<1x64x1xf32, #tpu.memory_space<vmem>>, vector<1x64x1xf32>,
    return
  }
  func.func @transform_0(%arg0: i32, %arg1: i32) -> (i32, i32, i32) {
    %c0_i32 = arith.constant 0 : i32
    %c0_i32_0 = arith.constant 0 : i32
    return %arg0, %c0_i32, %arg1 : i32, i32, i32
  }
  func.func @transform_1(%arg0: i32, %arg1: i32) -> (i32, i32) {
    %c0_i32 = arith.constant 0 : i32
    %c0_i32_0 = arith.constant 0 : i32
    %c0_i32_1 = arith.constant 0 : i32
    return %c0_i32, %c0_i32_0 : i32, i32
  }
  func.func @transform_2(%arg0: i32, %arg1: i32) -> (i32, i32, i32) {
    %c0_i32 = arith.constant 0 : i32
    %c0_i32_0 = arith.constant 0 : i32
    %c0_i32_1 = arith.constant 0 : i32
    return %arg0, %c0_i32, %c0_i32_0 : i32, i32, i32
  }
  func.func @transform_3(%arg0: i32, %arg1: i32) -> (i32, i32, i32) {
    %c0_i32 = arith.constant 0 : i32
    %c0_i32_0 = arith.constant 0 : i32
    %c0_i32_1 = arith.constant 0 : i32
    return %arg0, %c0_i32, %c0_i32_0 : i32, i32, i32
  }
}

</mosaic_0001>

<llo_original>
// kernel: tpu_custom_call.1
$region0: #{tpu_custom_call.1}
  #allocation0 [shape = 'u32[]', space=smem, size = 0x4, offset = 0x4, fixed_abs, tag = 'smem constant byte address 0x4 - core index']
  #allocation1 [shape = 'u32[144,128]{1,0:T(1,128)}', space=vmem, size = 0x12000, scoped, tag = 'internal scratch']
  %s0 = inlined_call_operand.vmem [shape: f32[2,4,512], index: 0, kind: input, shape index: {}]
  %s1 = inlined_call_operand.vmem [shape: f32[64,4], index: 1, kind: input, shape index: {}]
  %s2 = inlined_call_operand.vmem [shape: f32[2,64,1], index: 2, kind: output, shape index: {0}]
  %s3 = inlined_call_operand.vmem [shape: f32[2,64,1], index: 3, kind: output, shape index: {1}]
  %4 = xla_tuple %s2, %s3
  %s5 = sld [smem:[#allocation0]]
  $region53: #{tpu_custom_call.1} parent=0
    _
  %s7 = ssub.s32 1, %s5
  %s8 = scalar_select 0, %s7, %s5
  loop: start=0, step=1, limit=4
  $region2: #{tpu_custom_call.1} parent=0 // loop_pre_header
    _
  $region3: #{tpu_custom_call.1} parent=0 // loop_header
    %s10 = sphi 0, %s14
    %p11 = scmp.ge.s32.totalorder %s10, 4
    %s17 = sphi 0, %s29
    %s18 = sphi 0, %s25
    %s19 = sphi 0, %s17
    %s20 = sphi 0, %s18
    %s21 = sphi 0, %s19
    %s22 = sphi 0, %s20
    %s34 = sphi 0, %s36
    %s37 = sphi 0, %s34
    %s38 = sphi 0, %s37
    %s54 = sphi 0, %s38
    %s58 = sphi 0, %s58
    %s60 = sphi 0, %s58
    %s61 = sphi 0, %s60
    %s75 = sphi 0, %s61
    %s81 = sphi 0, %s83
    %s84 = sphi 0, %s81
    %s85 = sphi 0, %s84
    %s101 = sphi 0, %s85
    %s107 = sphi 0, %s109
    %s110 = sphi 0, %s107
    %s111 = sphi 0, %s110
    %s127 = sphi 0, %s111
  $region4: #{tpu_custom_call.1} parent=0 // loop_header_branch
    %13 = sbr.rel (%p11) target = $region8
  $region5: #{tpu_custom_call.1} parent=0 // loop_body
    %s15 = ssub.s32 %s10, 1
    %s16 = ssub.s32 %s10, 2
    %s23 = sadd.s32 1, %s18
    %p24 = scmp.ge.s32.totalorder %s23, 1
    %s25 = scalar_select %p24, 0, %s23
    %s26 = sadd.s32 1, %s17
    %s27 = scalar_select %p24, %s26, %s17
    %p28 = scmp.ge.s32.totalorder %s27, 2
    %s29 = scalar_select %p28, 0, %s27
    %s30 = ssub.s32 %s17, %s29
    %s31 = ssub.s32 %s18, %s25
    %s32 = sor.u32 %s30, %s31
    %p33 = scmp.eq.s32.totalorder %s32, 0
    %s35 = sadd.s32 %s34, 1
    %s36 = scalar_select %p33, %s34, %s35
    %p39 = pneg %p33
    %p40 = scmp.eq.s32.totalorder %s10, 1
    %p41 = por %p39, %p40
    %p42 = scmp.ne.s32.totalorder %s34, %s37
    %p43 = scmp.eq.s32.totalorder %s10, 0
    %p44 = por %p42, %p43
    %p45 = scmp.ne.s32.totalorder %s34, %s37
    %p46 = scmp.eq.s32.totalorder %s15, 1
    %p47 = por %p45, %p46
    %p48 = scmp.ne.s32.totalorder %s37, %s38
    %p49 = scmp.eq.s32.totalorder %s15, 0
    %p50 = por %p48, %p49
    %p51 = scmp.ne.s32.totalorder %s37, %s38
    %p52 = scmp.eq.s32.totalorder %s16, 1
    %p53 = por %p51, %p52
    %p55 = scmp.ne.s32.totalorder %s38, %s54
    %p56 = scmp.eq.s32.totalorder %s16, 0
    %p57 = por %p55, %p56
    %s59 = sadd.s32 %s58, 1
    %p62 = scmp.eq.s32.totalorder %s10, 1
    %p63 = scmp.ne.s32.totalorder %s58, %s60
    %p64 = scmp.eq.s32.totalorder %s10, 0
    %p65 = por %p63, %p64
    %p66 = scmp.ne.s32.totalorder %s58, %s60
    %p67 = scmp.eq.s32.totalorder %s15, 1
    %p68 = por %p66, %p67
    %p69 = scmp.ne.s32.totalorder %s60, %s61
    %p70 = scmp.eq.s32.totalorder %s15, 0
    %p71 = por %p69, %p70
    %p72 = scmp.ne.s32.totalorder %s60, %s61
    %p73 = scmp.eq.s32.totalorder %s16, 1
    %p74 = por %p72, %p73
    %p76 = scmp.ne.s32.totalorder %s61, %s75
    %p77 = scmp.eq.s32.totalorder %s16, 0
    %p78 = por %p76, %p77
    %s79 = ssub.s32 %s17, %s29
    %p80 = scmp.eq.s32.totalorder %s79, 0
    %s82 = sadd.s32 %s81, 1
    %s83 = scalar_select %p80, %s81, %s82
    %p86 = pneg %p80
    %p87 = scmp.eq.s32.totalorder %s10, 1
    %p88 = por %p86, %p87
    %p89 = scmp.ne.s32.totalorder %s81, %s84
    %p90 = scmp.eq.s32.totalorder %s10, 0
    %p91 = por %p89, %p90
    %p92 = scmp.ne.s32.totalorder %s81, %s84
    %p93 = scmp.eq.s32.totalorder %s15, 1
    %p94 = por %p92, %p93
    %p95 = scmp.ne.s32.totalorder %s84, %s85
    %p96 = scmp.eq.s32.totalorder %s15, 0
    %p97 = por %p95, %p96
    %p98 = scmp.ne.s32.totalorder %s84, %s85
    %p99 = scmp.eq.s32.totalorder %s16, 1
    %p100 = por %p98, %p99
    %p102 = scmp.ne.s32.totalorder %s85, %s101
    %p103 = scmp.eq.s32.totalorder %s16, 0
    %p104 = por %p102, %p103
    %s105 = ssub.s32 %s17, %s29
    %p106 = scmp.eq.s32.totalorder %s105, 0
    %s108 = sadd.s32 %s107, 1
    %s109 = scalar_select %p106, %s107, %s108
    %p112 = pneg %p106
    %p113 = scmp.eq.s32.totalorder %s10, 1
    %p114 = por %p112, %p113
    %p115 = scmp.ne.s32.totalorder %s107, %s110
    %p116 = scmp.eq.s32.totalorder %s10, 0
    %p117 = por %p115, %p116
    %p118 = scmp.ne.s32.totalorder %s107, %s110
    %p119 = scmp.eq.s32.totalorder %s15, 1
    %p120 = por %p118, %p119
    %p121 = scmp.ne.s32.totalorder %s110, %s111
    %p122 = scmp.eq.s32.totalorder %s15, 0
    %p123 = por %p121, %p122
    %p124 = scmp.ne.s32.totalorder %s110, %s111
    %p125 = scmp.eq.s32.totalorder %s16, 1
    %p126 = por %p124, %p125
    %p128 = scmp.ne.s32.totalorder %s111, %s127
    %p129 = scmp.eq.s32.totalorder %s16, 0
    %p130 = por %p128, %p129
    %p131 = scmp.le.s32.totalorder 1, %s10
    %p132 = scmp.lt.s32.totalorder %s10, 3
    %p133 = pnand %p131, %p132
    %p134 = pneg %p133
    // Predicated region
    $region9: #{tpu_custom_call.1} parent=5 // pred_check
      _
    $region10: #{tpu_custom_call.1} parent=5 // pred_check_branch
      %136 = sbr.rel (%p133) target = $region12
    $region11: #{tpu_custom_call.1} parent=5 // pred_region
      %s137 = ssub.s32 %s10, 1
      // Predicated region
      $region13: #{tpu_custom_call.1} parent=11 // pred_check
        %p138 = pneg %p71
      $region14: #{tpu_custom_call.1} parent=11 // pred_check_branch
        %140 = sbr.rel (%p138) target = $region16
      $region15: #{tpu_custom_call.1} parent=11 // pred_region
        _
      $region16: #{tpu_custom_call.1} parent=11 // pred_fallthru
        _
    $region12: #{tpu_custom_call.1} parent=5 // pred_fallthru
      _
    %p141 = scmp.lt.s32.totalorder %s10, 2
    // Predicated region
    $region17: #{tpu_custom_call.1} parent=5 // pred_check
      %p142 = pneg %p141
    $region18: #{tpu_custom_call.1} parent=5 // pred_check_branch
      %144 = sbr.rel (%p142) target = $region20
    $region19: #{tpu_custom_call.1} parent=5 // pred_region
      // Predicated region
      $region21: #{tpu_custom_call.1} parent=19 // pred_check
        %p145 = pneg %p44
      $region22: #{tpu_custom_call.1} parent=19 // pred_check_branch
        %147 = sbr.rel (%p145) target = $region24
      $region23: #{tpu_custom_call.1} parent=19 // pred_region
        %s148 = smul.u32 4, %s18
        %p149 = scmp.lt.s32.totalorder %s17, 1
        %s150 = scalar_select %p149, %s17, 1
        %p151 = scmp.lt.s32.totalorder %s148, 3
        %s152 = scalar_select %p151, %s148, 3
        %s153 = smul.addr %s150, 4
        %s154 = sadd.s32 %s152, %s153
        %s155 = smul.addr %s154, 4
        %s156 = scalar_lea.vmem %s0, %s155
        %s157 = smul.u32 4, %s18
      $region24: #{tpu_custom_call.1} parent=19 // pred_fallthru
        _
    $region20: #{tpu_custom_call.1} parent=5 // pred_fallthru
      _
    %p158 = scmp.le.s32.totalorder 1, %s10
    %p159 = scmp.lt.s32.totalorder %s10, 3
    %p160 = pnand %p158, %p159
    %p161 = pneg %p160
    // Predicated region
    $region25: #{tpu_custom_call.1} parent=5 // pred_check
      _
    $region26: #{tpu_custom_call.1} parent=5 // pred_check_branch
      %163 = sbr.rel (%p160) target = $region28
    $region27: #{tpu_custom_call.1} parent=5 // pred_region
      %s164 = ssub.s32 %s10, 1
      %s165 = smul.u32 4, %s20
      %p166 = scmp.lt.s32.totalorder %s19, 1
      %s167 = scalar_select %p166, %s19, 1
      %p168 = scmp.lt.s32.totalorder %s165, 3
      %s169 = scalar_select %p168, %s165, 3
      %s170 = smul.addr %s167, 4
      %s171 = sadd.s32 %s169, %s170
      %s172 = smul.addr %s171, 4
      %s173 = scalar_lea.vmem %s0, %s172
      %p174 = pneg %p50
      %p175 = pneg %p47
      %p176 = pneg %p71
      %p177 = pneg %p68
      %p178 = pneg %p97
      %p179 = pneg %p94
      %p180 = scmp.lt.s32.totalorder %s19, 1
      %s181 = scalar_select %p180, %s19, 1
      %s182 = smul.addr %s181, 8
      %s183 = smul.addr %s182, 8
      %s184 = scalar_lea.vmem %s2, %s183
      %p185 = pneg %p123
      %p186 = pneg %p120
      %p187 = scmp.lt.s32.totalorder %s19, 1
      %s188 = scalar_select %p187, %s19, 1
      %s189 = smul.addr %s188, 8
      %s190 = smul.addr %s189, 8
      %s191 = scalar_lea.vmem %s3, %s190
      %s192 = smul.u32 4, %s20
      %p193 = scmp.lt.s32.totalorder %s19, 1
      %s194 = scalar_select %p193, %s19, 1
      %p195 = scmp.lt.s32.totalorder %s192, 3
      %s196 = scalar_select %p195, %s192, 3
      %s197 = smul.addr %s194, 4
      %s198 = sadd.s32 %s196, %s197
      %s199 = smul.addr %s198, 4
      %s200 = scalar_lea.vmem %s0, %s199
      %s201 = smul.u32 4, %s20
      %p202 = scmp.lt.s32.totalorder %s19, 1
      %s203 = scalar_select %p202, %s19, 1
      %s204 = smul.addr %s203, 8
      %s205 = smul.addr %s204, 8
      %s206 = scalar_lea.vmem %s2, %s205
      %p207 = scmp.lt.s32.totalorder %s19, 1
      %s208 = scalar_select %p207, %s19, 1
      %s209 = smul.addr %s208, 8
      %s210 = smul.addr %s209, 8
      %s211 = scalar_lea.vmem %s3, %s210
      %p212 = scmp.eq.s32.totalorder %s20, 0
      // Predicated region
      $region29: #{tpu_custom_call.1} parent=27 // pred_check
        %p213 = pneg %p212
      $region30: #{tpu_custom_call.1} parent=27 // pred_check_branch
        %215 = sbr.rel (%p213) target = $region32
      $region31: #{tpu_custom_call.1} parent=27 // pred_region
        %vm216 = vcmask 7168
        %217 = vst.msk [vmem:[%s206] sm:$0xff] %vm216, 0.0
        %218 = vst.msk [vmem:[%s206 + $0x8] sm:$0xff] %vm216, 0.0
        %219 = vst.msk [vmem:[%s206 + $0x10] sm:$0xff] %vm216, 0.0
        %220 = vst.msk [vmem:[%s206 + $0x18] sm:$0xff] %vm216, 0.0
        %221 = vst.msk [vmem:[%s206 + $0x20] sm:$0xff] %vm216, 0.0
        %222 = vst.msk [vmem:[%s206 + $0x28] sm:$0xff] %vm216, 0.0
        %223 = vst.msk [vmem:[%s206 + $0x30] sm:$0xff] %vm216, 0.0
        %224 = vst.msk [vmem:[%s206 + $0x38] sm:$0xff] %vm216, 0.0
        %225 = vst.msk [vmem:[%s211] sm:$0xff] %vm216, 0.0
        %226 = vst.msk [vmem:[%s211 + $0x8] sm:$0xff] %vm216, 0.0
        %227 = vst.msk [vmem:[%s211 + $0x10] sm:$0xff] %vm216, 0.0
        %228 = vst.msk [vmem:[%s211 + $0x18] sm:$0xff] %vm216, 0.0
        %229 = vst.msk [vmem:[%s211 + $0x20] sm:$0xff] %vm216, 0.0
        %230 = vst.msk [vmem:[%s211 + $0x28] sm:$0xff] %vm216, 0.0
        %231 = vst.msk [vmem:[%s211 + $0x30] sm:$0xff] %vm216, 0.0
        %232 = vst.msk [vmem:[%s211 + $0x38] sm:$0xff] %vm216, 0.0
      $region32: #{tpu_custom_call.1} parent=27 // pred_fallthru
        _
      %v233 = vld [vmem:[%s1] sm:$0xff]
      %v234 = vld [vmem:[%s1 + $0x8] sm:$0xff]
      %v235 = vld [vmem:[%s1 + $0x10] sm:$0xff]
      %v236 = vld [vmem:[%s1 + $0x18] sm:$0xff]
      %v237 = vld [vmem:[%s1 + $0x20] sm:$0xff]
      %v238 = vld [vmem:[%s1 + $0x28] sm:$0xff]
      %v239 = vld [vmem:[%s1 + $0x30] sm:$0xff]
      %v240 = vld [vmem:[%s1 + $0x38] sm:$0xff]
      %v241 = vld [vmem:[%s200] sm:$0xff]
      %v242 = vld [vmem:[%s200 + $0x8] sm:$0xff]
      %v245 = vcombine.high %v241, %v241
      %v246 = vcombine.high %v242, %v242
      %vm247 = vcmask 31744
      %v249 = vsel %vm247, %v233, 0
      %v252 = vsel %vm247, %v234, 0
      %v255 = vsel %vm247, %v235, 0
      %v258 = vsel %vm247, %v236, 0
      %v261 = vsel %vm247, %v237, 0
      %v264 = vsel %vm247, %v238, 0
      %v267 = vsel %vm247, %v239, 0
      %v270 = vsel %vm247, %v240, 0
      %vm272 = vcmask 1043456
      %v273 = vsel %vm272, %v241, 0
      %v275 = vsel %vm272, %v245, 0
      %v277 = vsel %vm272, %v242, 0
      %v279 = vsel %vm272, %v246, 0
      %281 = vmatprep.subr.mxu0 %v275
      %282 = vmatpush1.msra.mxu0 %v273
      %283 = vmatprep.subr.mxu0 0.0
      %284 = vmatpush1.msra.mxu0 0.0
      %285 = vmatprep.subr.mxu0 0.0
      %286 = vmatpush1.msra.mxu0 0.0
      %287 = vmatprep.subr.mxu0 0.0
      %288 = vmatpush1.msra.mxu0 0.0
      %289 = vmatprep.subr.mxu0 0.0
      %290 = vmatpush1.msra.mxu0 0.0
      %291 = vmatprep.subr.mxu0 0.0
      %292 = vmatpush1.msra.mxu0 0.0
      %293 = vmatprep.subr.mxu0 0.0
      %294 = vmatpush1.msra.mxu0 0.0
      %295 = vmatprep.subr.mxu0 0.0
      %296 = vmatpush1.msra.mxu0 0.0
      %297 = vmatprep.subr.mxu0 0.0
      %298 = vmatpush1.msra.mxu0 0.0
      %299 = vmatprep.subr.mxu0 0.0
      %300 = vmatpush1.msra.mxu0 0.0
      %301 = vmatprep.subr.mxu0 0.0
      %302 = vmatpush1.msra.mxu0 0.0
      %303 = vmatprep.subr.mxu0 0.0
      %304 = vmatpush1.msra.mxu0 0.0
      %305 = vmatprep.subr.mxu0 0.0
      %306 = vmatpush1.msra.mxu0 0.0
      %307 = vmatprep.subr.mxu0 0.0
      %308 = vmatpush1.msra.mxu0 0.0
      %309 = vmatprep.subr.mxu0 0.0
      %310 = vmatpush1.msra.mxu0 0.0
      %311 = vmatprep.subr.mxu0 0.0
      %312 = vmatpush1.msra.mxu0 0.0
      %313 = vmatprep.subr.mxu0 0.0
      %314 = vmatpush1.msra.mxu0 0.0
      %315 = vmatprep.subr.mxu0 0.0
      %316 = vmatpush1.msra.mxu0 0.0
      %317 = vmatprep.subr.mxu0 0.0
      %318 = vmatpush1.msra.mxu0 0.0
      %319 = vmatprep.subr.mxu0 0.0
      %320 = vmatpush1.msra.mxu0 0.0
      %321 = vmatprep.subr.mxu0 0.0
      %322 = vmatpush1.msra.mxu0 0.0
      %323 = vmatprep.subr.mxu0 0.0
      %324 = vmatpush1.msra.mxu0 0.0
      %325 = vmatprep.subr.mxu0 0.0
      %326 = vmatpush1.msra.mxu0 0.0
      %327 = vmatprep.subr.mxu0 0.0
      %328 = vmatpush1.msra.mxu0 0.0
      %329 = vmatprep.subr.mxu0 0.0
      %330 = vmatpush1.msra.mxu0 0.0
      %331 = vmatprep.subr.mxu0 0.0
      %332 = vmatpush1.msra.mxu0 0.0
      %333 = vmatprep.subr.mxu0 0.0
      %334 = vmatpush1.msra.mxu0 0.0
      %335 = vmatprep.subr.mxu0 0.0
      %336 = vmatpush1.msra.mxu0 0.0
      %337 = vmatprep.subr.mxu0 0.0
      %338 = vmatpush1.msra.mxu0 0.0
      %339 = vmatprep.subr.mxu0 0.0
      %340 = vmatpush1.msra.mxu0 0.0
      %341 = vmatprep.subr.mxu0 0.0
      %342 = vmatpush1.msra.mxu0 0.0
      %343 = vmatprep.subr.mxu0 0.0
      %344 = vmatpush1.msra.mxu0 0.0
      %345 = vmatprep.mubr.f32.mxu0 0.0
      %346 = vmatmul.mubr.f32.gmra.mrb[0].mxu0 %v249
      %v347 = vpop.f32.mrb[0].mxu0
      %v348 = vadd.f32 0.0, %v347
      %v349 = vpop.f32.mrb[0].mxu0
      %v350 = vadd.f32 0.0, %v349
      %351 = vmatprep.mubr.f32.mxu0 0.0
      %352 = vmatmul.mubr.f32.gmra.mrb[0].mxu0 %v252
      %v353 = vpop.f32.mrb[0].mxu0
      %v354 = vadd.f32 0.0, %v353
      %v355 = vpop.f32.mrb[0].mxu0
      %v356 = vadd.f32 0.0, %v355
      %357 = vmatprep.mubr.f32.mxu0 0.0
      %358 = vmatmul.mubr.f32.gmra.mrb[0].mxu0 %v255
      %v359 = vpop.f32.mrb[0].mxu0
      %v360 = vadd.f32 0.0, %v359
      %v361 = vpop.f32.mrb[0].mxu0
      %v362 = vadd.f32 0.0, %v361
      %363 = vmatprep.mubr.f32.mxu0 0.0
      %364 = vmatmul.mubr.f32.gmra.mrb[0].mxu0 %v258
      %v365 = vpop.f32.mrb[0].mxu0
      %v366 = vadd.f32 0.0, %v365
      %v367 = vpop.f32.mrb[0].mxu0
      %v368 = vadd.f32 0.0, %v367
      %369 = vmatprep.mubr.f32.mxu0 0.0
      %370 = vmatmul.mubr.f32.gmra.mrb[0].mxu0 %v261
      %v371 = vpop.f32.mrb[0].mxu0
      %v372 = vadd.f32 0.0, %v371
      %v373 = vpop.f32.mrb[0].mxu0
      %v374 = vadd.f32 0.0, %v373
      %375 = vmatprep.mubr.f32.mxu0 0.0
      %376 = vmatmul.mubr.f32.gmra.mrb[0].mxu0 %v264
      %v377 = vpop.f32.mrb[0].mxu0
      %v378 = vadd.f32 0.0, %v377
      %v379 = vpop.f32.mrb[0].mxu0
      %v380 = vadd.f32 0.0, %v379
      %381 = vmatprep.mubr.f32.mxu0 0.0
      %382 = vmatmul.mubr.f32.gmra.mrb[0].mxu0 %v267
      %v383 = vpop.f32.mrb[0].mxu0
      %v384 = vadd.f32 0.0, %v383
      %v385 = vpop.f32.mrb[0].mxu0
      %v386 = vadd.f32 0.0, %v385
      %387 = vmatprep.mubr.f32.mxu0 0.0
      %388 = vmatmul.mubr.f32.gmra.mrb[0].mxu0 %v270
      %v389 = vpop.f32.mrb[0].mxu0
      %v390 = vadd.f32 0.0, %v389
      %v391 = vpop.f32.mrb[0].mxu0
      %v392 = vadd.f32 0.0, %v391
      %393 = vdwg.mxu0
      %394 = vmatprep.subr.mxu0 %v279
      %395 = vmatpush1.msra.mxu0 %v277
      %396 = vmatprep.subr.mxu0 0.0
      %397 = vmatpush1.msra.mxu0 0.0
      %398 = vmatprep.subr.mxu0 0.0
      %399 = vmatpush1.msra.mxu0 0.0
      %400 = vmatprep.subr.mxu0 0.0
      %401 = vmatpush1.msra.mxu0 0.0
      %402 = vmatprep.subr.mxu0 0.0
      %403 = vmatpush1.msra.mxu0 0.0
      %404 = vmatprep.subr.mxu0 0.0
      %405 = vmatpush1.msra.mxu0 0.0
      %406 = vmatprep.subr.mxu0 0.0
      %407 = vmatpush1.msra.mxu0 0.0
      %408 = vmatprep.subr.mxu0 0.0
      %409 = vmatpush1.msra.mxu0 0.0
      %410 = vmatprep.subr.mxu0 0.0
      %411 = vmatpush1.msra.mxu0 0.0
      %412 = vmatprep.subr.mxu0 0.0
      %413 = vmatpush1.msra.mxu0 0.0
      %414 = vmatprep.subr.mxu0 0.0
      %415 = vmatpush1.msra.mxu0 0.0
      %416 = vmatprep.subr.mxu0 0.0
      %417 = vmatpush1.msra.mxu0 0.0
      %418 = vmatprep.subr.mxu0 0.0
      %419 = vmatpush1.msra.mxu0 0.0
      %420 = vmatprep.subr.mxu0 0.0
      %421 = vmatpush1.msra.mxu0 0.0
      %422 = vmatprep.subr.mxu0 0.0
      %423 = vmatpush1.msra.mxu0 0.0
      %424 = vmatprep.subr.mxu0 0.0
      %425 = vmatpush1.msra.mxu0 0.0
      %426 = vmatprep.subr.mxu0 0.0
      %427 = vmatpush1.msra.mxu0 0.0
      %428 = vmatprep.subr.mxu0 0.0
      %429 = vmatpush1.msra.mxu0 0.0
      %430 = vmatprep.subr.mxu0 0.0
      %431 = vmatpush1.msra.mxu0 0.0
      %432 = vmatprep.subr.mxu0 0.0
      %433 = vmatpush1.msra.mxu0 0.0
      %434 = vmatprep.subr.mxu0 0.0
      %435 = vmatpush1.msra.mxu0 0.0
      %436 = vmatprep.subr.mxu0 0.0
      %437 = vmatpush1.msra.mxu0 0.0
      %438 = vmatprep.subr.mxu0 0.0
      %439 = vmatpush1.msra.mxu0 0.0
      %440 = vmatprep.subr.mxu0 0.0
      %441 = vmatpush1.msra.mxu0 0.0
      %442 = vmatprep.subr.mxu0 0.0
      %443 = vmatpush1.msra.mxu0 0.0
      %444 = vmatprep.subr.mxu0 0.0
      %445 = vmatpush1.msra.mxu0 0.0
      %446 = vmatprep.subr.mxu0 0.0
      %447 = vmatpush1.msra.mxu0 0.0
      %448 = vmatprep.subr.mxu0 0.0
      %449 = vmatpush1.msra.mxu0 0.0
      %450 = vmatprep.subr.mxu0 0.0
      %451 = vmatpush1.msra.mxu0 0.0
      %452 = vmatprep.subr.mxu0 0.0
      %453 = vmatpush1.msra.mxu0 0.0
      %454 = vmatprep.subr.mxu0 0.0
      %455 = vmatpush1.msra.mxu0 0.0
      %456 = vmatprep.subr.mxu0 0.0
      %457 = vmatpush1.msra.mxu0 0.0
      %458 = vmatprep.mubr.f32.mxu0 0.0
      %459 = vmatmul.mubr.f32.gmra.mrb[0].mxu0 %v249
      %v460 = vpop.f32.mrb[0].mxu0
      %v461 = vadd.f32 0.0, %v460
      %v462 = vpop.f32.mrb[0].mxu0
      %v463 = vadd.f32 0.0, %v462
      %464 = vmatprep.mubr.f32.mxu0 0.0
      %465 = vmatmul.mubr.f32.gmra.mrb[0].mxu0 %v252
      %v466 = vpop.f32.mrb[0].mxu0
      %v467 = vadd.f32 0.0, %v466
      %v468 = vpop.f32.mrb[0].mxu0
      %v469 = vadd.f32 0.0, %v468
      %470 = vmatprep.mubr.f32.mxu0 0.0
      %471 = vmatmul.mubr.f32.gmra.mrb[0].mxu0 %v255
      %v472 = vpop.f32.mrb[0].mxu0
      %v473 = vadd.f32 0.0, %v472
      %v474 = vpop.f32.mrb[0].mxu0
      %v475 = vadd.f32 0.0, %v474
      %476 = vmatprep.mubr.f32.mxu0 0.0
      %477 = vmatmul.mubr.f32.gmra.mrb[0].mxu0 %v258
      %v478 = vpop.f32.mrb[0].mxu0
      %v479 = vadd.f32 0.0, %v478
      %v480 = vpop.f32.mrb[0].mxu0
      %v481 = vadd.f32 0.0, %v480
      %482 = vmatprep.mubr.f32.mxu0 0.0
      %483 = vmatmul.mubr.f32.gmra.mrb[0].mxu0 %v261
      %v484 = vpop.f32.mrb[0].mxu0
      %v485 = vadd.f32 0.0, %v484
      %v486 = vpop.f32.mrb[0].mxu0
      %v487 = vadd.f32 0.0, %v486
      %488 = vmatprep.mubr.f32.mxu0 0.0
      %489 = vmatmul.mubr.f32.gmra.mrb[0].mxu0 %v264
      %v490 = vpop.f32.mrb[0].mxu0
      %v491 = vadd.f32 0.0, %v490
      %v492 = vpop.f32.mrb[0].mxu0
      %v493 = vadd.f32 0.0, %v492
      %494 = vmatprep.mubr.f32.mxu0 0.0
      %495 = vmatmul.mubr.f32.gmra.mrb[0].mxu0 %v267
      %v496 = vpop.f32.mrb[0].mxu0
      %v497 = vadd.f32 0.0, %v496
      %v498 = vpop.f32.mrb[0].mxu0
      %v499 = vadd.f32 0.0, %v498
      %500 = vmatprep.mubr.f32.mxu0 0.0
      %501 = vmatmul.mubr.f32.gmra.mrb[0].mxu0 %v270
      %v502 = vpop.f32.mrb[0].mxu0
      %v503 = vadd.f32 0.0, %v502
      %v504 = vpop.f32.mrb[0].mxu0
      %v505 = vadd.f32 0.0, %v504
      %506 = vdwg.mxu0
      %v507 = vld [vmem:[%s206] sm:$0xff]
      %v508 = vld [vmem:[%s206 + $0x8] sm:$0xff]
      %v509 = vld [vmem:[%s206 + $0x10] sm:$0xff]
      %v510 = vld [vmem:[%s206 + $0x18] sm:$0xff]
      %v511 = vld [vmem:[%s206 + $0x20] sm:$0xff]
      %v512 = vld [vmem:[%s206 + $0x28] sm:$0xff]
      %v513 = vld [vmem:[%s206 + $0x30] sm:$0xff]
      %v514 = vld [vmem:[%s206 + $0x38] sm:$0xff]
      %v515 = vadd.f32 %v348, %v350
      %v516 = vadd.f32 %v515, %v461
      %v517 = vadd.f32 %v516, %v463
      %518 = vadd.xlane.f32.xlu0 %v517
      %v519 = vpop.xlane.xlu0 %518
      %v520 = vadd.f32 %v354, %v356
      %v521 = vadd.f32 %v520, %v467
      %v522 = vadd.f32 %v521, %v469
      %523 = vadd.xlane.f32.xlu0 %v522
      %v524 = vpop.xlane.xlu0 %523
      %v525 = vadd.f32 %v360, %v362
      %v526 = vadd.f32 %v525, %v473
      %v527 = vadd.f32 %v526, %v475
      %528 = vadd.xlane.f32.xlu0 %v527
      %v529 = vpop.xlane.xlu0 %528
      %v530 = vadd.f32 %v366, %v368
      %v531 = vadd.f32 %v530, %v479
      %v532 = vadd.f32 %v531, %v481
      %533 = vadd.xlane.f32.xlu0 %v532
      %v534 = vpop.xlane.xlu0 %533
      %v535 = vadd.f32 %v372, %v374
      %v536 = vadd.f32 %v535, %v485
      %v537 = vadd.f32 %v536, %v487
      %538 = vadd.xlane.f32.xlu0 %v537
      %v539 = vpop.xlane.xlu0 %538
      %v540 = vadd.f32 %v378, %v380
      %v541 = vadd.f32 %v540, %v491
      %v542 = vadd.f32 %v541, %v493
      %543 = vadd.xlane.f32.xlu0 %v542
      %v544 = vpop.xlane.xlu0 %543
      %v545 = vadd.f32 %v384, %v386
      %v546 = vadd.f32 %v545, %v497
      %v547 = vadd.f32 %v546, %v499
      %548 = vadd.xlane.f32.xlu0 %v547
      %v549 = vpop.xlane.xlu0 %548
      %v550 = vadd.f32 %v390, %v392
      %v551 = vadd.f32 %v550, %v503
      %v552 = vadd.f32 %v551, %v505
      %553 = vadd.xlane.f32.xlu0 %v552
      %v554 = vpop.xlane.xlu0 %553
      %v555 = vadd.f32 %v507, %v519
      %v556 = vadd.f32 %v508, %v524
      %v557 = vadd.f32 %v509, %v529
      %v558 = vadd.f32 %v510, %v534
      %v559 = vadd.f32 %v511, %v539
      %v560 = vadd.f32 %v512, %v544
      %v561 = vadd.f32 %v513, %v549
      %v562 = vadd.f32 %v514, %v554
      %vm563 = vcmask 7168
      %564 = vst.msk [vmem:[%s206] sm:$0xff] %vm563, %v555
      %565 = vst.msk [vmem:[%s206 + $0x8] sm:$0xff] %vm563, %v556
      %566 = vst.msk [vmem:[%s206 + $0x10] sm:$0xff] %vm563, %v557
      %567 = vst.msk [vmem:[%s206 + $0x18] sm:$0xff] %vm563, %v558
      %568 = vst.msk [vmem:[%s206 + $0x20] sm:$0xff] %vm563, %v559
      %569 = vst.msk [vmem:[%s206 + $0x28] sm:$0xff] %vm563, %v560
      %570 = vst.msk [vmem:[%s206 + $0x30] sm:$0xff] %vm563, %v561
      %571 = vst.msk [vmem:[%s206 + $0x38] sm:$0xff] %vm563, %v562
      %v572 = vld [vmem:[%s211] sm:$0xff]
      %v573 = vld [vmem:[%s211 + $0x8] sm:$0xff]
      %v574 = vld [vmem:[%s211 + $0x10] sm:$0xff]
      %v575 = vld [vmem:[%s211 + $0x18] sm:$0xff]
      %v576 = vld [vmem:[%s211 + $0x20] sm:$0xff]
      %v577 = vld [vmem:[%s211 + $0x28] sm:$0xff]
      %v578 = vld [vmem:[%s211 + $0x30] sm:$0xff]
      %v579 = vld [vmem:[%s211 + $0x38] sm:$0xff]
      %v580 = vmul.f32 %v348, %v348
      %v581 = vmul.f32 %v350, %v350
      %v582 = vmul.f32 %v461, %v461
      %v583 = vmul.f32 %v463, %v463
      %v584 = vmul.f32 %v354, %v354
      %v585 = vmul.f32 %v356, %v356
      %v586 = vmul.f32 %v467, %v467
      %v587 = vmul.f32 %v469, %v469
      %v588 = vmul.f32 %v360, %v360
      %v589 = vmul.f32 %v362, %v362
      %v590 = vmul.f32 %v473, %v473
      %v591 = vmul.f32 %v475, %v475
      %v592 = vmul.f32 %v366, %v366
      %v593 = vmul.f32 %v368, %v368
      %v594 = vmul.f32 %v479, %v479
      %v595 = vmul.f32 %v481, %v481
      %v596 = vmul.f32 %v372, %v372
      %v597 = vmul.f32 %v374, %v374
      %v598 = vmul.f32 %v485, %v485
      %v599 = vmul.f32 %v487, %v487
      %v600 = vmul.f32 %v378, %v378
      %v601 = vmul.f32 %v380, %v380
      %v602 = vmul.f32 %v491, %v491
      %v603 = vmul.f32 %v493, %v493
      %v604 = vmul.f32 %v384, %v384
      %v605 = vmul.f32 %v386, %v386
      %v606 = vmul.f32 %v497, %v497
      %v607 = vmul.f32 %v499, %v499
      %v608 = vmul.f32 %v390, %v390
      %v609 = vmul.f32 %v392, %v392
      %v610 = vmul.f32 %v503, %v503
      %v611 = vmul.f32 %v505, %v505
      %v612 = vadd.f32 %v580, %v581
      %v613 = vadd.f32 %v612, %v582
      %v614 = vadd.f32 %v613, %v583
      %615 = vadd.xlane.f32.xlu0 %v614
      %v616 = vpop.xlane.xlu0 %615
      %v617 = vadd.f32 %v584, %v585
      %v618 = vadd.f32 %v617, %v586
      %v619 = vadd.f32 %v618, %v587
      %620 = vadd.xlane.f32.xlu0 %v619
      %v621 = vpop.xlane.xlu0 %620
      %v622 = vadd.f32 %v588, %v589
      %v623 = vadd.f32 %v622, %v590
      %v624 = vadd.f32 %v623, %v591
      %625 = vadd.xlane.f32.xlu0 %v624
      %v626 = vpop.xlane.xlu0 %625
      %v627 = vadd.f32 %v592, %v593
      %v628 = vadd.f32 %v627, %v594
      %v629 = vadd.f32 %v628, %v595
      %630 = vadd.xlane.f32.xlu0 %v629
      %v631 = vpop.xlane.xlu0 %630
      %v632 = vadd.f32 %v596, %v597
      %v633 = vadd.f32 %v632, %v598
      %v634 = vadd.f32 %v633, %v599
      %635 = vadd.xlane.f32.xlu0 %v634
      %v636 = vpop.xlane.xlu0 %635
      %v637 = vadd.f32 %v600, %v601
      %v638 = vadd.f32 %v637, %v602
      %v639 = vadd.f32 %v638, %v603
      %640 = vadd.xlane.f32.xlu0 %v639
      %v641 = vpop.xlane.xlu0 %640
      %v642 = vadd.f32 %v604, %v605
      %v643 = vadd.f32 %v642, %v606
      %v644 = vadd.f32 %v643, %v607
      %645 = vadd.xlane.f32.xlu0 %v644
      %v646 = vpop.xlane.xlu0 %645
      %v647 = vadd.f32 %v608, %v609
      %v648 = vadd.f32 %v647, %v610
      %v649 = vadd.f32 %v648, %v611
      %650 = vadd.xlane.f32.xlu0 %v649
      %v651 = vpop.xlane.xlu0 %650
      %v652 = vadd.f32 %v572, %v616
      %v653 = vadd.f32 %v573, %v621
      %v654 = vadd.f32 %v574, %v626
      %v655 = vadd.f32 %v575, %v631
      %v656 = vadd.f32 %v576, %v636
      %v657 = vadd.f32 %v577, %v641
      %v658 = vadd.f32 %v578, %v646
      %v659 = vadd.f32 %v579, %v651
      %660 = vst.msk [vmem:[%s211] sm:$0xff] %vm563, %v652
      %661 = vst.msk [vmem:[%s211 + $0x8] sm:$0xff] %vm563, %v653
      %662 = vst.msk [vmem:[%s211 + $0x10] sm:$0xff] %vm563, %v654
      %663 = vst.msk [vmem:[%s211 + $0x18] sm:$0xff] %vm563, %v655
      %664 = vst.msk [vmem:[%s211 + $0x20] sm:$0xff] %vm563, %v656
      %665 = vst.msk [vmem:[%s211 + $0x28] sm:$0xff] %vm563, %v657
      %666 = vst.msk [vmem:[%s211 + $0x30] sm:$0xff] %vm563, %v658
      %667 = vst.msk [vmem:[%s211 + $0x38] sm:$0xff] %vm563, %v659
      %p668 = scmp.lt.s32.totalorder %s19, 1
      %s669 = scalar_select %p668, %s19, 1
      %s670 = smul.addr %s669, 8
      %s671 = smul.addr %s670, 8
      %s672 = scalar_lea.vmem %s2, %s671
      %p673 = scmp.lt.s32.totalorder %s19, 1
      %s674 = scalar_select %p673, %s19, 1
      %s675 = smul.addr %s674, 8
      %s676 = smul.addr %s675, 8
      %s677 = scalar_lea.vmem %s3, %s676
      // Predicated region
      $region33: #{tpu_custom_call.1} parent=27 // pred_check
        %p678 = pneg %p94
      $region34: #{tpu_custom_call.1} parent=27 // pred_check_branch
        %680 = sbr.rel (%p678) target = $region36
      $region35: #{tpu_custom_call.1} parent=27 // pred_region
        _
      $region36: #{tpu_custom_call.1} parent=27 // pred_fallthru
        _
      // Predicated region
      $region37: #{tpu_custom_call.1} parent=27 // pred_check
        %p681 = pneg %p120
      $region38: #{tpu_custom_call.1} parent=27 // pred_check_branch
        %683 = sbr.rel (%p681) target = $region40
      $region39: #{tpu_custom_call.1} parent=27 // pred_region
        _
      $region40: #{tpu_custom_call.1} parent=27 // pred_fallthru
        _
    $region28: #{tpu_custom_call.1} parent=5 // pred_fallthru
      _
    %p684 = scmp.le.s32.totalorder 2, %s10
    // Predicated region
    $region41: #{tpu_custom_call.1} parent=5 // pred_check
      %p685 = pneg %p684
    $region42: #{tpu_custom_call.1} parent=5 // pred_check_branch
      %687 = sbr.rel (%p685) target = $region44
    $region43: #{tpu_custom_call.1} parent=5 // pred_region
      %s688 = ssub.s32 %s10, 2
      // Predicated region
      $region45: #{tpu_custom_call.1} parent=43 // pred_check
        %p689 = pneg %p100
      $region46: #{tpu_custom_call.1} parent=43 // pred_check_branch
        %691 = sbr.rel (%p689) target = $region48
      $region47: #{tpu_custom_call.1} parent=43 // pred_region
        %p692 = scmp.lt.s32.totalorder %s21, 1
        %s693 = scalar_select %p692, %s21, 1
        %s694 = smul.addr %s693, 8
        %s695 = smul.addr %s694, 8
        %s696 = scalar_lea.vmem %s2, %s695
      $region48: #{tpu_custom_call.1} parent=43 // pred_fallthru
        _
      // Predicated region
      $region49: #{tpu_custom_call.1} parent=43 // pred_check
        %p697 = pneg %p126
      $region50: #{tpu_custom_call.1} parent=43 // pred_check_branch
        %699 = sbr.rel (%p697) target = $region52
      $region51: #{tpu_custom_call.1} parent=43 // pred_region
        %p700 = scmp.lt.s32.totalorder %s21, 1
        %s701 = scalar_select %p700, %s21, 1
        %s702 = smul.addr %s701, 8
        %s703 = smul.addr %s702, 8
        %s704 = scalar_lea.vmem %s3, %s703
      $region52: #{tpu_custom_call.1} parent=43 // pred_fallthru
        _
    $region44: #{tpu_custom_call.1} parent=5 // pred_fallthru
      _
  $region6: #{tpu_custom_call.1} parent=0 // loop_footer
    %s14 = sadd.s32 1, %s10
  $region7: #{tpu_custom_call.1} parent=0 // loop_footer_branch
    %9 = sbr.rel target = $region3
  $region8: #{tpu_custom_call.1} parent=0 // loop_exit
    _

</llo_original>
